<compile_context>
chip_gen: v7x
topology: tpu7x:2x2x1
jax: 0.10.0
libtpu: 0.0.40
codegen_flags: <defaults>
</compile_context>

<pallas_src>
import jax
import jax.numpy as jnp
import numpy as np
from jax.experimental import pallas as pl
from jax.experimental.pallas import tpu as pltpu


IMG = 24                  # input spatial size
KS = 6                    # conv kernel / stride (non-overlapping)
OUT_HW = IMG // KS        # 4
C_OUT = 4                 # conv output channels
IN_FEATS = IMG * IMG      # 576 : fused first-matmul K dim
N_CLASSES = 10
OUT_LANES = 128           # lane-dense output width (logits live in first 10)
NEG_BIG = -1e30           # "minus infinity" bias for padded output lanes
TILE_B_MAX = 2048         # per-step batch tile upper bound (bf16: ~2.4 MB/buffer)


# ----------------------------- Pallas kernel -------------------------------

def fused_kernel(x_ref, w1_ref, b1_ref, w2_ref, b2_ref, w3_ref, b3_ref,
                 w4_ref, b4_ref, o_ref):
    # x / weights are bf16; all accumulation in f32.
    h = jnp.dot(x_ref[...], w1_ref[...],
                preferred_element_type=jnp.float32) + b1_ref[...]
    h = jnp.maximum(h, 0.0)
    h = jnp.dot(h.astype(jnp.bfloat16), w2_ref[...],
                preferred_element_type=jnp.float32) + b2_ref[...]
    h = jnp.maximum(h, 0.0)
    h = jnp.dot(h.astype(jnp.bfloat16), w3_ref[...],
                preferred_element_type=jnp.float32) + b3_ref[...]
    h = jnp.maximum(h, 0.0)
    # Final layer padded to 128 lanes; padded lanes carry a -1e30 bias so they
    # contribute exp(...)=0 to the softmax normalizer.
    logits = jnp.dot(h.astype(jnp.bfloat16), w4_ref[...],
                     preferred_element_type=jnp.float32) + b4_ref[...]
    m = jnp.max(logits, axis=-1, keepdims=True)
    z = logits - m
    lse = jnp.log(jnp.sum(jnp.exp(z), axis=-1, keepdims=True))
    o_ref[...] = z - lse


# --------------------------- one-time param prep ----------------------------

def fold_conv_into_fc1(w_conv, b_conv, w1, b1):
    """Fold Conv2d(1,4,6,stride=6) + NCHW flatten + fc1 into (576,32) W_eff, b_eff.

    conv out (b,c,i,j) = sum_{kh,kw} x[b,0,6i+kh,6j+kw] * w_conv[c,0,kh,kw] + b_conv[c]
    flatten m = c*16 + i*4 + j ; fc1: sum_m flat[m] * w1[m,n] + b1[n]
    =>  W_eff[p, n] with pixel p = (6i+kh)*24 + (6j+kw) = row-major (i,kh,j,kw).
    """
    n_hidden = w1.shape[1]
    w_c = w_conv[:, 0, :, :]                                   # (c, kh, kw)
    w1_r = w1.reshape(C_OUT, OUT_HW, OUT_HW, n_hidden)         # (c, i, j, n)
    w_eff = jnp.einsum("chw,cijn->ihjwn", w_c, w1_r).reshape(IN_FEATS, n_hidden)
    b_eff = b1 + jnp.einsum("c,cijn->n", b_conv.reshape(C_OUT), w1_r)[None, :]
    return w_eff, b_eff


def prepare_params(params):
    """Fold conv+fc1, pad the output layer to 128 lanes, cast weights to bf16.

    Run ONCE per set of parameters (hoisted out of the per-call path).
    Biases stay f32.
    """
    (w_conv, b_conv, w1, b1, w2, b2, w3, b3, w4, b4) = params
    w_eff, b_eff = fold_conv_into_fc1(w_conv, b_conv, w1, b1)

    # lane-dense final layer: (4, 10) -> (4, 128), bias padded with -1e30
    w4_pad = jnp.zeros((w4.shape[0], OUT_LANES), jnp.float32).at[:, :N_CLASSES].set(w4)
    b4_pad = jnp.full((1, OUT_LANES), NEG_BIG, jnp.float32).at[:, :N_CLASSES].set(b4)

    return (
        w_eff.astype(jnp.bfloat16), b_eff.astype(jnp.float32),
        w2.astype(jnp.bfloat16),    b2.astype(jnp.float32),
        w3.astype(jnp.bfloat16),    b3.astype(jnp.float32),
        w4_pad.astype(jnp.bfloat16), b4_pad,
    )


def _round_up(n, m):
    return ((n + m - 1) // m) * m


# ------------------------------- wrapper ------------------------------------

def cfc_forward(x, prepared):
    """x: (B, 1, 24, 24) f32 NCHW. prepared: output of prepare_params()."""
    B = x.shape[0]

    # bf16 input stream (halves dominant HBM traffic); NCHW (C=1) flatten.
    x_flat = x.reshape(B, IN_FEATS).astype(jnp.bfloat16)

    # Balanced batch tiling: >=2 grid steps (v7x dual-TC), even step count,
    # <8 padded rows per tile, tiles sublane(8)-aligned.
    ntiles = max(2, pl.cdiv(B, TILE_B_MAX))
    if ntiles % 2:
        ntiles += 1
    tile_b = _round_up(pl.cdiv(B, ntiles), 8)
    b_pad = tile_b * ntiles
    if b_pad != B:
        x_flat = jnp.pad(x_flat, ((0, b_pad - B), (0, 0)))

    def const_spec(shape):
        # weights/biases: same whole block at every grid step (stay resident)
        return pl.BlockSpec(shape, lambda i: (0, 0))

    out = pl.pallas_call(
        fused_kernel,
        out_shape=jax.ShapeDtypeStruct((b_pad, OUT_LANES), jnp.float32),
        grid=(ntiles,),
        in_specs=[pl.BlockSpec((tile_b, IN_FEATS), lambda i: (i, 0))]
                 + [const_spec(w.shape) for w in prepared],
        out_specs=pl.BlockSpec((tile_b, OUT_LANES), lambda i: (i, 0)),
        compiler_params=pltpu.CompilerParams(
            dimension_semantics=("parallel",),
        ),
    )(x_flat, *prepared)
    return out[:B, :N_CLASSES]


# --------------------------- deterministic params ---------------------------

def init_params(key):
    def uniform(k, shape, fan_in):
        bound = 1.0 / np.sqrt(fan_in)
        return jax.random.uniform(k, shape, jnp.float32, -bound, bound)

    ks = jax.random.split(key, 10)
    w_conv = uniform(ks[0], (4, 1, 6, 6), 36)    # Conv2d(1, 4, 6, stride=6)
    b_conv = uniform(ks[1], (1, 4), 36)
    w1 = uniform(ks[2], (64, 32), 64)            # fc1
    b1 = uniform(ks[3], (1, 32), 64)
    w2 = uniform(ks[4], (32, 16), 32)            # fc2
    b2 = uniform(ks[5], (1, 16), 32)
    w3 = uniform(ks[6], (16, 4), 16)             # fc3
    b3 = uniform(ks[7], (1, 4), 16)
    w4 = uniform(ks[8], (4, 10), 4)              # output
    b4 = uniform(ks[9], (1, 10), 4)
    return (w_conv, b_conv, w1, b1, w2, b2, w3, b3, w4, b4)


# ------------------------------ reference ----------------------------------

def reference(x, params):
    (w_conv, b_conv, w1, b1, w2, b2, w3, b3, w4, b4) = params
    B = x.shape[0]
    conv = jax.lax.conv_general_dilated(
        x, w_conv, window_strides=(6, 6), padding="VALID",
        dimension_numbers=("NCHW", "OIHW", "NCHW"),
    ) + b_conv.reshape(1, 4, 1, 1)
    flat = conv.reshape(B, -1)
    h = jax.nn.relu(flat @ w1 + b1)
    h = jax.nn.relu(h @ w2 + b2)
    h = jax.nn.relu(h @ w3 + b3)
    logits = h @ w4 + b4
    return jax.nn.log_softmax(logits, axis=1)


# -------------------------------- main --------------------------------------

if __name__ == "__main__":
    key = jax.random.PRNGKey(0)
    k_x, k_p = jax.random.split(key)
    B = 2
    x = jax.random.normal(k_x, (B, 1, 24, 24), jnp.float32)   # NCHW
    params = init_params(k_p)

    prepared = jax.block_until_ready(prepare_params(params))  # hoisted, one-time

    fwd = jax.jit(cfc_forward)
    out = jax.block_until_ready(fwd(x, prepared))
    ref = jax.block_until_ready(reference(x, params))

    assert out.shape == (B, 10)
    # bf16 inputs over the K=576 contraction (f32 accumulate) => looser tolerance
    np.testing.assert_allclose(np.asarray(out), np.asarray(ref), rtol=2e-2, atol=2e-2)

    print("KERNEL_OK")
</pallas_src>

<mosaic_0001>
module attributes {stable_mosaic.version = 11 : i64} {
  func.func @fused_kernel(%arg0: i32, %arg1: memref<8x576xbf16, #tpu.memory_space<vmem>>, %arg2: memref<576x32xbf16, #tpu.memory_space<vmem>>, %arg3: memref<1x32xf32, #tpu.memory_space<vmem>>, %arg4: memref<32x16xbf16, #tpu.memory_space<vmem>>, %arg5: memref<1x16xf32, #tpu.memory_space<vmem>>, %arg6: memref<16x4xbf16, #tpu.memory_space<vmem>>, %arg7: memref<1x4xf32, #tpu.memory_space<vmem>>, %arg8: memref<4x128xbf16, #tpu.memory_space<vmem>>, %arg9: memref<1x128xf32, #tpu.memory_space<vmem>>, %arg10: memref<8x128xf32, #tpu.memory_space<vmem>>) attributes {dimension_semantics = [#tpu.dimension_semantics<parallel>], iteration_bounds = array<i64: 2>, scalar_prefetch = 0 : i64, scratch_operands = 0 : i64, tpu.core_type = #tpu.core_type<tc>, window_params = [{transform_indices = @transform_0, window_bounds = array<i64: 8, 576>}, {pipeline_mode = #tpu.pipeline_mode<synchronous>, transform_indices = @transform_1, window_bounds = array<i64: 576, 32>}, {pipeline_mode = #tpu.pipeline_mode<synchronous>, transform_indices = @transform_2, window_bounds = array<i64: 1, 32>}, {pipeline_mode = #tpu.pipeline_mode<synchronous>, transform_indices = @transform_3, window_bounds = array<i64: 32, 16>}, {pipeline_mode = #tpu.pipeline_mode<synchronous>, transform_indices = @transform_4, window_bounds = array<i64: 1, 16>}, {pipeline_mode = #tpu.pipeline_mode<synchronous>, transform_indices = @transform_5, window_bounds = array<i64: 16, 4>}, {pipeline_mode = #tpu.pipeline_mode<synchronous>, transform_indices = @transform_6, window_bounds = array<i64: 1, 4>}, {pipeline_mode = #tpu.pipeline_mode<synchronous>, transform_indices = @transform_7, window_bounds = array<i64: 4, 128>}, {pipeline_mode = #tpu.pipeline_mode<synchronous>, transform_indices = @transform_8, window_bounds = array<i64: 1, 128>}, {transform_indices = @transform_9, window_bounds = array<i64: 8, 128>}]} {
    %c0 = arith.constant 0 : index
    %c0_0 = arith.constant 0 : index
    %0 = vector.load %arg1[%c0, %c0_0] : memref<8x576xbf16, #tpu.memory_space<vmem>>, vector<8x576xbf16>
    %c0_1 = arith.constant 0 : index
    %c0_2 = arith.constant 0 : index
    %1 = vector.load %arg2[%c0_1, %c0_2] : memref<576x32xbf16, #tpu.memory_space<vmem>>, vector<576x32xbf16>
    %cst = arith.constant dense<0.000000e+00> : vector<8x32xf32>
    %2 = tpu.matmul %0, %1, %cst {dimension_numbers = #tpu.dot_dimension_numbers<[1], [0], [0], [1], [0, 0, 1, 1], [], []>} : vector<8x576xbf16>, vector<576x32xbf16>, vector<8x32xf32> -> vector<8x32xf32>
    %c0_3 = arith.constant 0 : index
    %c0_4 = arith.constant 0 : index
    %3 = vector.load %arg3[%c0_3, %c0_4] : memref<1x32xf32, #tpu.memory_space<vmem>>, vector<1x32xf32>
    %4 = vector.broadcast %3 : vector<1x32xf32> to vector<8x32xf32>
    %5 = arith.addf %2, %4 : vector<8x32xf32>
    %cst_5 = arith.constant 0.000000e+00 : f32
    %6 = vector.broadcast %cst_5 : f32 to vector<8x32xf32>
    %7 = arith.maximumf %5, %6 : vector<8x32xf32>
    %8 = arith.truncf %7 : vector<8x32xf32> to vector<8x32xbf16>
    %c0_6 = arith.constant 0 : index
    %c0_7 = arith.constant 0 : index
    %9 = vector.load %arg4[%c0_6, %c0_7] : memref<32x16xbf16, #tpu.memory_space<vmem>>, vector<32x16xbf16>
    %cst_8 = arith.constant dense<0.000000e+00> : vector<8x16xf32>
    %10 = tpu.matmul %8, %9, %cst_8 {dimension_numbers = #tpu.dot_dimension_numbers<[1], [0], [0], [1], [0, 0, 1, 1], [], []>} : vector<8x32xbf16>, vector<32x16xbf16>, vector<8x16xf32> -> vector<8x16xf32>
    %c0_9 = arith.constant 0 : index
    %c0_10 = arith.constant 0 : index
    %11 = vector.load %arg5[%c0_9, %c0_10] : memref<1x16xf32, #tpu.memory_space<vmem>>, vector<1x16xf32>
    %12 = vector.broadcast %11 : vector<1x16xf32> to vector<8x16xf32>
    %13 = arith.addf %10, %12 : vector<8x16xf32>
    %cst_11 = arith.constant 0.000000e+00 : f32
    %14 = vector.broadcast %cst_11 : f32 to vector<8x16xf32>
    %15 = arith.maximumf %13, %14 : vector<8x16xf32>
    %16 = arith.truncf %15 : vector<8x16xf32> to vector<8x16xbf16>
    %c0_12 = arith.constant 0 : index
    %c0_13 = arith.constant 0 : index
    %17 = vector.load %arg6[%c0_12, %c0_13] : memref<16x4xbf16, #tpu.memory_space<vmem>>, vector<16x4xbf16>
    %cst_14 = arith.constant dense<0.000000e+00> : vector<8x4xf32>
    %18 = tpu.matmul %16, %17, %cst_14 {dimension_numbers = #tpu.dot_dimension_numbers<[1], [0], [0], [1], [0, 0, 1, 1], [], []>} : vector<8x16xbf16>, vector<16x4xbf16>, vector<8x4xf32> -> vector<8x4xf32>
    %c0_15 = arith.constant 0 : index
    %c0_16 = arith.constant 0 : index
    %19 = vector.load %arg7[%c0_15, %c0_16] : memref<1x4xf32, #tpu.memory_space<vmem>>, vector<1x4xf32>
    %20 = vector.broadcast %19 : vector<1x4xf32> to vector<8x4xf32>
    %21 = arith.addf %18, %20 : vector<8x4xf32>
    %cst_17 = arith.constant 0.000000e+00 : f32
    %22 = vector.broadcast %cst_17 : f32 to vector<8x4xf32>
    %23 = arith.maximumf %21, %22 : vector<8x4xf32>
    %24 = arith.truncf %23 : vector<8x4xf32> to vector<8x4xbf16>
    %c0_18 = arith.constant 0 : index
    %c0_19 = arith.constant 0 : index
    %25 = vector.load %arg8[%c0_18, %c0_19] : memref<4x128xbf16, #tpu.memory_space<vmem>>, vector<4x128xbf16>
    %cst_20 = arith.constant dense<0.000000e+00> : vector<8x128xf32>
    %26 = tpu.matmul %24, %25, %cst_20 {dimension_numbers = #tpu.dot_dimension_numbers<[1], [0], [0], [1], [0, 0, 1, 1], [], []>} : vector<8x4xbf16>, vector<4x128xbf16>, vector<8x128xf32> -> vector<8x128xf32>
    %c0_21 = arith.constant 0 : index
    %c0_22 = arith.constant 0 : index
    %27 = vector.load %arg9[%c0_21, %c0_22] : memref<1x128xf32, #tpu.memory_space<vmem>>, vector<1x128xf32>
    %28 = vector.broadcast %27 : vector<1x128xf32> to vector<8x128xf32>
    %29 = arith.addf %26, %28 : vector<8x128xf32>
    %cst_23 = arith.constant dense<0xFF800000> : vector<8xf32>
    %30 = vector.multi_reduction <maximumf>, %29, %cst_23 [1] : vector<8x128xf32> to vector<8xf32>
    %31 = vector.shape_cast %30 : vector<8xf32> to vector<8x1xf32>
    %32 = vector.broadcast %31 : vector<8x1xf32> to vector<8x128xf32>
    %33 = arith.subf %29, %32 : vector<8x128xf32>
    %34 = math.exp %33 : vector<8x128xf32>
    %cst_24 = arith.constant dense<0.000000e+00> : vector<8xf32>
    %35 = vector.multi_reduction <add>, %34, %cst_24 [1] : vector<8x128xf32> to vector<8xf32>
    %36 = vector.shape_cast %35 : vector<8xf32> to vector<8x1xf32>
    %37 = math.log %36 : vector<8x1xf32>
    %38 = vector.broadcast %37 : vector<8x1xf32> to vector<8x128xf32>
    %39 = arith.subf %33, %38 : vector<8x128xf32>
    %c0_25 = arith.constant 0 : index
    %c0_26 = arith.constant 0 : index
    %40 = vector.load %arg10[%c0_25, %c0_26] : memref<8x128xf32, #tpu.memory_space<vmem>>, vector<8x128xf32>
    tpu.vector_store %arg10[%c0_25, %c0_26], %39 {strides = array<i32>} : memref<8x128xf32, #tpu.memory_space<vmem>>, vector<8x128xf32>,
    return
  }
  func.func @transform_0(%arg0: i32) -> (i32, i32) {
    %c0_i32 = arith.constant 0 : i32
    %c0_i32_0 = arith.constant 0 : i32
    return %arg0, %c0_i32 : i32, i32
  }
  func.func @transform_1(%arg0: i32) -> (i32, i32) {
    %c0_i32 = arith.constant 0 : i32
    %c0_i32_0 = arith.constant 0 : i32
    %c0_i32_1 = arith.constant 0 : i32
    return %c0_i32, %c0_i32_0 : i32, i32
  }
  func.func @transform_2(%arg0: i32) -> (i32, i32) {
    %c0_i32 = arith.constant 0 : i32
    %c0_i32_0 = arith.constant 0 : i32
    %c0_i32_1 = arith.constant 0 : i32
    return %c0_i32, %c0_i32_0 : i32, i32
  }
  func.func @transform_3(%arg0: i32) -> (i32, i32) {
    %c0_i32 = arith.constant 0 : i32
    %c0_i32_0 = arith.constant 0 : i32
    %c0_i32_1 = arith.constant 0 : i32
    return %c0_i32, %c0_i32_0 : i32, i32
  }
  func.func @transform_4(%arg0: i32) -> (i32, i32) {
    %c0_i32 = arith.constant 0 : i32
    %c0_i32_0 = arith.constant 0 : i32
    %c0_i32_1 = arith.constant 0 : i32
    return %c0_i32, %c0_i32_0 : i32, i32
  }
  func.func @transform_5(%arg0: i32) -> (i32, i32) {
    %c0_i32 = arith.constant 0 : i32
    %c0_i32_0 = arith.constant 0 : i32
    %c0_i32_1 = arith.constant 0 : i32
    return %c0_i32, %c0_i32_0 : i32, i32
  }
  func.func @transform_6(%arg0: i32) -> (i32, i32) {
    %c0_i32 = arith.constant 0 : i32
    %c0_i32_0 = arith.constant 0 : i32
    %c0_i32_1 = arith.constant 0 : i32
    return %c0_i32, %c0_i32_0 : i32, i32
  }
  func.func @transform_7(%arg0: i32) -> (i32, i32) {
    %c0_i32 = arith.constant 0 : i32
    %c0_i32_0 = arith.constant 0 : i32
    %c0_i32_1 = arith.constant 0 : i32
    return %c0_i32, %c0_i32_0 : i32, i32
  }
  func.func @transform_8(%arg0: i32) -> (i32, i32) {
    %c0_i32 = arith.constant 0 : i32
    %c0_i32_0 = arith.constant 0 : i32
    %c0_i32_1 = arith.constant 0 : i32
    return %c0_i32, %c0_i32_0 : i32, i32
  }
  func.func @transform_9(%arg0: i32) -> (i32, i32) {
    %c0_i32 = arith.constant 0 : i32
    %c0_i32_0 = arith.constant 0 : i32
    return %arg0, %c0_i32 : i32, i32
  }
}

</mosaic_0001>

<llo_original>
// kernel: cfc_forward.1
$region0: #{cfc_forward.1}
  #allocation0 [shape = 'u32[]', space=smem, size = 0x4, offset = 0x4, fixed_abs, tag = 'smem constant byte address 0x4 - core index']
  #allocation1 [shape = 'u32[144,128]{1,0:T(1,128)}', space=vmem, size = 0x12000, scoped, tag = 'internal scratch']
  %s0 = inlined_call_operand.vmem [shape: bf16[16,576], index: 0, kind: input, shape index: {}]
  %s1 = inlined_call_operand.vmem [shape: bf16[576,32], index: 1, kind: input, shape index: {}]
  %s2 = inlined_call_operand.vmem [shape: f32[1,32], index: 2, kind: input, shape index: {}]
  %s3 = inlined_call_operand.vmem [shape: bf16[32,16], index: 3, kind: input, shape index: {}]
  %s4 = inlined_call_operand.vmem [shape: f32[1,16], index: 4, kind: input, shape index: {}]
  %s5 = inlined_call_operand.vmem [shape: bf16[16,4], index: 5, kind: input, shape index: {}]
  %s6 = inlined_call_operand.vmem [shape: f32[1,4], index: 6, kind: input, shape index: {}]
  %s7 = inlined_call_operand.vmem [shape: bf16[4,128], index: 7, kind: input, shape index: {}]
  %s8 = inlined_call_operand.vmem [shape: f32[1,128], index: 8, kind: input, shape index: {}]
  %s9 = inlined_call_operand.vmem [shape: f32[16,128], index: 9, kind: output, shape index: {}]
  %s10 = sld [smem:[#allocation0]]
  $region69: #{cfc_forward.1} parent=0
    _
  %s12 = ssub.s32 1, %s10
  %s13 = scalar_select 0, %s12, %s10
  loop: start=0, step=1, limit=4
  $region2: #{cfc_forward.1} parent=0 // loop_pre_header
    _
  $region3: #{cfc_forward.1} parent=0 // loop_header
    %s15 = sphi 0, %s19
    %p16 = scmp.ge.s32.totalorder %s15, 4
    %s25 = sphi 0, %s27
    %s28 = sphi 0, %s25
    %s29 = sphi 0, %s28
    %s45 = sphi 0, %s29
    %s49 = sphi 0, %s49
    %s51 = sphi 0, %s49
    %s52 = sphi 0, %s51
    %s66 = sphi 0, %s52
    %s70 = sphi 0, %s70
    %s72 = sphi 0, %s70
    %s73 = sphi 0, %s72
    %s87 = sphi 0, %s73
    %s91 = sphi 0, %s91
    %s93 = sphi 0, %s91
    %s94 = sphi 0, %s93
    %s108 = sphi 0, %s94
    %s112 = sphi 0, %s112
    %s114 = sphi 0, %s112
    %s115 = sphi 0, %s114
    %s129 = sphi 0, %s115
    %s133 = sphi 0, %s133
    %s135 = sphi 0, %s133
    %s136 = sphi 0, %s135
    %s150 = sphi 0, %s136
    %s154 = sphi 0, %s154
    %s156 = sphi 0, %s154
    %s157 = sphi 0, %s156
    %s171 = sphi 0, %s157
    %s175 = sphi 0, %s175
    %s177 = sphi 0, %s175
    %s178 = sphi 0, %s177
    %s192 = sphi 0, %s178
    %s196 = sphi 0, %s196
    %s198 = sphi 0, %s196
    %s199 = sphi 0, %s198
    %s213 = sphi 0, %s199
    %s219 = sphi 0, %s221
    %s222 = sphi 0, %s219
    %s223 = sphi 0, %s222
    %s239 = sphi 0, %s223
  $region4: #{cfc_forward.1} parent=0 // loop_header_branch
    %18 = sbr.rel (%p16) target = $region8
  $region5: #{cfc_forward.1} parent=0 // loop_body
    %s20 = ssub.s32 %s15, 1
    %s21 = ssub.s32 %s15, 2
    %s22 = sadd.s32 %s15, 1
    %s23 = ssub.s32 %s15, %s22
    %p24 = scmp.eq.s32.totalorder %s23, 0
    %s26 = sadd.s32 %s25, 1
    %s27 = scalar_select %p24, %s25, %s26
    %p30 = pneg %p24
    %p31 = scmp.eq.s32.totalorder %s15, 1
    %p32 = por %p30, %p31
    %p33 = scmp.ne.s32.totalorder %s25, %s28
    %p34 = scmp.eq.s32.totalorder %s15, 0
    %p35 = por %p33, %p34
    %p36 = scmp.ne.s32.totalorder %s25, %s28
    %p37 = scmp.eq.s32.totalorder %s20, 1
    %p38 = por %p36, %p37
    %p39 = scmp.ne.s32.totalorder %s28, %s29
    %p40 = scmp.eq.s32.totalorder %s20, 0
    %p41 = por %p39, %p40
    %p42 = scmp.ne.s32.totalorder %s28, %s29
    %p43 = scmp.eq.s32.totalorder %s21, 1
    %p44 = por %p42, %p43
    %p46 = scmp.ne.s32.totalorder %s29, %s45
    %p47 = scmp.eq.s32.totalorder %s21, 0
    %p48 = por %p46, %p47
    %s50 = sadd.s32 %s49, 1
    %p53 = scmp.eq.s32.totalorder %s15, 1
    %p54 = scmp.ne.s32.totalorder %s49, %s51
    %p55 = scmp.eq.s32.totalorder %s15, 0
    %p56 = por %p54, %p55
    %p57 = scmp.ne.s32.totalorder %s49, %s51
    %p58 = scmp.eq.s32.totalorder %s20, 1
    %p59 = por %p57, %p58
    %p60 = scmp.ne.s32.totalorder %s51, %s52
    %p61 = scmp.eq.s32.totalorder %s20, 0
    %p62 = por %p60, %p61
    %p63 = scmp.ne.s32.totalorder %s51, %s52
    %p64 = scmp.eq.s32.totalorder %s21, 1
    %p65 = por %p63, %p64
    %p67 = scmp.ne.s32.totalorder %s52, %s66
    %p68 = scmp.eq.s32.totalorder %s21, 0
    %p69 = por %p67, %p68
    %s71 = sadd.s32 %s70, 1
    %p74 = scmp.eq.s32.totalorder %s15, 1
    %p75 = scmp.ne.s32.totalorder %s70, %s72
    %p76 = scmp.eq.s32.totalorder %s15, 0
    %p77 = por %p75, %p76
    %p78 = scmp.ne.s32.totalorder %s70, %s72
    %p79 = scmp.eq.s32.totalorder %s20, 1
    %p80 = por %p78, %p79
    %p81 = scmp.ne.s32.totalorder %s72, %s73
    %p82 = scmp.eq.s32.totalorder %s20, 0
    %p83 = por %p81, %p82
    %p84 = scmp.ne.s32.totalorder %s72, %s73
    %p85 = scmp.eq.s32.totalorder %s21, 1
    %p86 = por %p84, %p85
    %p88 = scmp.ne.s32.totalorder %s73, %s87
    %p89 = scmp.eq.s32.totalorder %s21, 0
    %p90 = por %p88, %p89
    %s92 = sadd.s32 %s91, 1
    %p95 = scmp.eq.s32.totalorder %s15, 1
    %p96 = scmp.ne.s32.totalorder %s91, %s93
    %p97 = scmp.eq.s32.totalorder %s15, 0
    %p98 = por %p96, %p97
    %p99 = scmp.ne.s32.totalorder %s91, %s93
    %p100 = scmp.eq.s32.totalorder %s20, 1
    %p101 = por %p99, %p100
    %p102 = scmp.ne.s32.totalorder %s93, %s94
    %p103 = scmp.eq.s32.totalorder %s20, 0
    %p104 = por %p102, %p103
    %p105 = scmp.ne.s32.totalorder %s93, %s94
    %p106 = scmp.eq.s32.totalorder %s21, 1
    %p107 = por %p105, %p106
    %p109 = scmp.ne.s32.totalorder %s94, %s108
    %p110 = scmp.eq.s32.totalorder %s21, 0
    %p111 = por %p109, %p110
    %s113 = sadd.s32 %s112, 1
    %p116 = scmp.eq.s32.totalorder %s15, 1
    %p117 = scmp.ne.s32.totalorder %s112, %s114
    %p118 = scmp.eq.s32.totalorder %s15, 0
    %p119 = por %p117, %p118
    %p120 = scmp.ne.s32.totalorder %s112, %s114
    %p121 = scmp.eq.s32.totalorder %s20, 1
    %p122 = por %p120, %p121
    %p123 = scmp.ne.s32.totalorder %s114, %s115
    %p124 = scmp.eq.s32.totalorder %s20, 0
    %p125 = por %p123, %p124
    %p126 = scmp.ne.s32.totalorder %s114, %s115
    %p127 = scmp.eq.s32.totalorder %s21, 1
    %p128 = por %p126, %p127
    %p130 = scmp.ne.s32.totalorder %s115, %s129
    %p131 = scmp.eq.s32.totalorder %s21, 0
    %p132 = por %p130, %p131
    %s134 = sadd.s32 %s133, 1
    %p137 = scmp.eq.s32.totalorder %s15, 1
    %p138 = scmp.ne.s32.totalorder %s133, %s135
    %p139 = scmp.eq.s32.totalorder %s15, 0
    %p140 = por %p138, %p139
    %p141 = scmp.ne.s32.totalorder %s133, %s135
    %p142 = scmp.eq.s32.totalorder %s20, 1
    %p143 = por %p141, %p142
    %p144 = scmp.ne.s32.totalorder %s135, %s136
    %p145 = scmp.eq.s32.totalorder %s20, 0
    %p146 = por %p144, %p145
    %p147 = scmp.ne.s32.totalorder %s135, %s136
    %p148 = scmp.eq.s32.totalorder %s21, 1
    %p149 = por %p147, %p148
    %p151 = scmp.ne.s32.totalorder %s136, %s150
    %p152 = scmp.eq.s32.totalorder %s21, 0
    %p153 = por %p151, %p152
    %s155 = sadd.s32 %s154, 1
    %p158 = scmp.eq.s32.totalorder %s15, 1
    %p159 = scmp.ne.s32.totalorder %s154, %s156
    %p160 = scmp.eq.s32.totalorder %s15, 0
    %p161 = por %p159, %p160
    %p162 = scmp.ne.s32.totalorder %s154, %s156
    %p163 = scmp.eq.s32.totalorder %s20, 1
    %p164 = por %p162, %p163
    %p165 = scmp.ne.s32.totalorder %s156, %s157
    %p166 = scmp.eq.s32.totalorder %s20, 0
    %p167 = por %p165, %p166
    %p168 = scmp.ne.s32.totalorder %s156, %s157
    %p169 = scmp.eq.s32.totalorder %s21, 1
    %p170 = por %p168, %p169
    %p172 = scmp.ne.s32.totalorder %s157, %s171
    %p173 = scmp.eq.s32.totalorder %s21, 0
    %p174 = por %p172, %p173
    %s176 = sadd.s32 %s175, 1
    %p179 = scmp.eq.s32.totalorder %s15, 1
    %p180 = scmp.ne.s32.totalorder %s175, %s177
    %p181 = scmp.eq.s32.totalorder %s15, 0
    %p182 = por %p180, %p181
    %p183 = scmp.ne.s32.totalorder %s175, %s177
    %p184 = scmp.eq.s32.totalorder %s20, 1
    %p185 = por %p183, %p184
    %p186 = scmp.ne.s32.totalorder %s177, %s178
    %p187 = scmp.eq.s32.totalorder %s20, 0
    %p188 = por %p186, %p187
    %p189 = scmp.ne.s32.totalorder %s177, %s178
    %p190 = scmp.eq.s32.totalorder %s21, 1
    %p191 = por %p189, %p190
    %p193 = scmp.ne.s32.totalorder %s178, %s192
    %p194 = scmp.eq.s32.totalorder %s21, 0
    %p195 = por %p193, %p194
    %s197 = sadd.s32 %s196, 1
    %p200 = scmp.eq.s32.totalorder %s15, 1
    %p201 = scmp.ne.s32.totalorder %s196, %s198
    %p202 = scmp.eq.s32.totalorder %s15, 0
    %p203 = por %p201, %p202
    %p204 = scmp.ne.s32.totalorder %s196, %s198
    %p205 = scmp.eq.s32.totalorder %s20, 1
    %p206 = por %p204, %p205
    %p207 = scmp.ne.s32.totalorder %s198, %s199
    %p208 = scmp.eq.s32.totalorder %s20, 0
    %p209 = por %p207, %p208
    %p210 = scmp.ne.s32.totalorder %s198, %s199
    %p211 = scmp.eq.s32.totalorder %s21, 1
    %p212 = por %p210, %p211
    %p214 = scmp.ne.s32.totalorder %s199, %s213
    %p215 = scmp.eq.s32.totalorder %s21, 0
    %p216 = por %p214, %p215
    %s217 = ssub.s32 %s15, %s22
    %p218 = scmp.eq.s32.totalorder %s217, 0
    %s220 = sadd.s32 %s219, 1
    %s221 = scalar_select %p218, %s219, %s220
    %p224 = pneg %p218
    %p225 = scmp.eq.s32.totalorder %s15, 1
    %p226 = por %p224, %p225
    %p227 = scmp.ne.s32.totalorder %s219, %s222
    %p228 = scmp.eq.s32.totalorder %s15, 0
    %p229 = por %p227, %p228
    %p230 = scmp.ne.s32.totalorder %s219, %s222
    %p231 = scmp.eq.s32.totalorder %s20, 1
    %p232 = por %p230, %p231
    %p233 = scmp.ne.s32.totalorder %s222, %s223
    %p234 = scmp.eq.s32.totalorder %s20, 0
    %p235 = por %p233, %p234
    %p236 = scmp.ne.s32.totalorder %s222, %s223
    %p237 = scmp.eq.s32.totalorder %s21, 1
    %p238 = por %p236, %p237
    %p240 = scmp.ne.s32.totalorder %s223, %s239
    %p241 = scmp.eq.s32.totalorder %s21, 0
    %p242 = por %p240, %p241
    %p243 = scmp.le.s32.totalorder 1, %s15
    %p244 = scmp.lt.s32.totalorder %s15, 3
    %p245 = pnand %p243, %p244
    %p246 = pneg %p245
    // Predicated region
    $region9: #{cfc_forward.1} parent=5 // pred_check
      _
    $region10: #{cfc_forward.1} parent=5 // pred_check_branch
      %248 = sbr.rel (%p245) target = $region12
    $region11: #{cfc_forward.1} parent=5 // pred_region
      %s249 = ssub.s32 %s15, 1
      // Predicated region
      $region13: #{cfc_forward.1} parent=11 // pred_check
        %p250 = pneg %p62
      $region14: #{cfc_forward.1} parent=11 // pred_check_branch
        %252 = sbr.rel (%p250) target = $region16
      $region15: #{cfc_forward.1} parent=11 // pred_region
        _
      $region16: #{cfc_forward.1} parent=11 // pred_fallthru
        _
      // Predicated region
      $region17: #{cfc_forward.1} parent=11 // pred_check
        %p253 = pneg %p83
      $region18: #{cfc_forward.1} parent=11 // pred_check_branch
        %255 = sbr.rel (%p253) target = $region20
      $region19: #{cfc_forward.1} parent=11 // pred_region
        _
      $region20: #{cfc_forward.1} parent=11 // pred_fallthru
        _
      // Predicated region
      $region21: #{cfc_forward.1} parent=11 // pred_check
        %p256 = pneg %p104
      $region22: #{cfc_forward.1} parent=11 // pred_check_branch
        %258 = sbr.rel (%p256) target = $region24
      $region23: #{cfc_forward.1} parent=11 // pred_region
        _
      $region24: #{cfc_forward.1} parent=11 // pred_fallthru
        _
      // Predicated region
      $region25: #{cfc_forward.1} parent=11 // pred_check
        %p259 = pneg %p125
      $region26: #{cfc_forward.1} parent=11 // pred_check_branch
        %261 = sbr.rel (%p259) target = $region28
      $region27: #{cfc_forward.1} parent=11 // pred_region
        _
      $region28: #{cfc_forward.1} parent=11 // pred_fallthru
        _
      // Predicated region
      $region29: #{cfc_forward.1} parent=11 // pred_check
        %p262 = pneg %p146
      $region30: #{cfc_forward.1} parent=11 // pred_check_branch
        %264 = sbr.rel (%p262) target = $region32
      $region31: #{cfc_forward.1} parent=11 // pred_region
        _
      $region32: #{cfc_forward.1} parent=11 // pred_fallthru
        _
      // Predicated region
      $region33: #{cfc_forward.1} parent=11 // pred_check
        %p265 = pneg %p167
      $region34: #{cfc_forward.1} parent=11 // pred_check_branch
        %267 = sbr.rel (%p265) target = $region36
      $region35: #{cfc_forward.1} parent=11 // pred_region
        _
      $region36: #{cfc_forward.1} parent=11 // pred_fallthru
        _
      // Predicated region
      $region37: #{cfc_forward.1} parent=11 // pred_check
        %p268 = pneg %p188
      $region38: #{cfc_forward.1} parent=11 // pred_check_branch
        %270 = sbr.rel (%p268) target = $region40
      $region39: #{cfc_forward.1} parent=11 // pred_region
        _
      $region40: #{cfc_forward.1} parent=11 // pred_fallthru
        _
      // Predicated region
      $region41: #{cfc_forward.1} parent=11 // pred_check
        %p271 = pneg %p209
      $region42: #{cfc_forward.1} parent=11 // pred_check_branch
        %273 = sbr.rel (%p271) target = $region44
      $region43: #{cfc_forward.1} parent=11 // pred_region
        _
      $region44: #{cfc_forward.1} parent=11 // pred_fallthru
        _
    $region12: #{cfc_forward.1} parent=5 // pred_fallthru
      _
    %p274 = scmp.lt.s32.totalorder %s15, 2
    // Predicated region
    $region45: #{cfc_forward.1} parent=5 // pred_check
      %p275 = pneg %p274
    $region46: #{cfc_forward.1} parent=5 // pred_check_branch
      %277 = sbr.rel (%p275) target = $region48
    $region47: #{cfc_forward.1} parent=5 // pred_region
      // Predicated region
      $region49: #{cfc_forward.1} parent=47 // pred_check
        %p278 = pneg %p35
      $region50: #{cfc_forward.1} parent=47 // pred_check_branch
        %280 = sbr.rel (%p278) target = $region52
      $region51: #{cfc_forward.1} parent=47 // pred_region
        %p281 = scmp.lt.s32.totalorder %s15, 1
        %s282 = scalar_select %p281, %s15, 1
        %s283 = smul.addr %s282, 5
        %s284 = smul.addr %s283, 4
        %s285 = scalar_lea.vmem %s0, %s284
      $region52: #{cfc_forward.1} parent=47 // pred_fallthru
        _
    $region48: #{cfc_forward.1} parent=5 // pred_fallthru
      _
    %p286 = scmp.le.s32.totalorder 1, %s15
    %p287 = scmp.lt.s32.totalorder %s15, 3
    %p288 = pnand %p286, %p287
    %p289 = pneg %p288
    // Predicated region
    $region53: #{cfc_forward.1} parent=5 // pred_check
      _
    $region54: #{cfc_forward.1} parent=5 // pred_check_branch
      %291 = sbr.rel (%p288) target = $region56
    $region55: #{cfc_forward.1} parent=5 // pred_region
      %s292 = ssub.s32 %s15, 1
      %p293 = scmp.lt.s32.totalorder %s20, 1
      %s294 = scalar_select %p293, %s20, 1
      %s295 = smul.addr %s294, 5
      %s296 = smul.addr %s295, 4
      %s297 = scalar_lea.vmem %s0, %s296
      %p298 = pneg %p41
      %p299 = pneg %p38
      %p300 = pneg %p62
      %p301 = pneg %p59
      %p302 = pneg %p83
      %p303 = pneg %p80
      %p304 = pneg %p104
      %p305 = pneg %p101
      %p306 = pneg %p125
      %p307 = pneg %p122
      %p308 = pneg %p146
      %p309 = pneg %p143
      %p310 = pneg %p167
      %p311 = pneg %p164
      %p312 = pneg %p188
      %p313 = pneg %p185
      %p314 = pneg %p209
      %p315 = pneg %p206
      %p316 = pneg %p235
      %p317 = pneg %p232
      %p318 = scmp.lt.s32.totalorder %s20, 1
      %s319 = scalar_select %p318, %s20, 1
      %s320 = smul.addr %s319, 8
      %s321 = scalar_lea.vmem %s9, %s320
      %p322 = scmp.lt.s32.totalorder %s20, 1
      %s323 = scalar_select %p322, %s20, 1
      %s324 = smul.addr %s323, 5
      %s325 = smul.addr %s324, 4
      %s326 = scalar_lea.vmem %s0, %s325
      %p327 = scmp.lt.s32.totalorder %s20, 1
      %s328 = scalar_select %p327, %s20, 1
      %s329 = smul.addr %s328, 8
      %s330 = scalar_lea.vmem %s9, %s329
      %v332 = vld [vmem:[%s326] sm:$0xff]
      %v333 = vld [vmem:[%s326 + $0x8] sm:$0xff]
      %v334 = vld [vmem:[%s326 + $0x10] sm:$0xf]
      %v335 = vld [vmem:[%s1] sm:$0xf]
      %v336 = vld [vmem:[%s1 + $0x4] sm:$0xf]
      %v337 = vld [vmem:[%s1 + $0x8] sm:$0xf]
      %v338 = vld [vmem:[%s1 + $0xc] sm:$0xf]
      %v339 = vld [vmem:[%s1 + $0x10] sm:$0xf]
      %v340 = vld [vmem:[%s1 + $0x14] sm:$0xf]
      %v341 = vld [vmem:[%s1 + $0x18] sm:$0xf]
      %v342 = vld [vmem:[%s1 + $0x1c] sm:$0xf]
      %v343 = vld [vmem:[%s1 + $0x20] sm:$0xf]
      %v344 = vld [vmem:[%s1 + $0x24] sm:$0xf]
      %v345 = vld [vmem:[%s1 + $0x28] sm:$0xf]
      %v346 = vld [vmem:[%s1 + $0x2c] sm:$0xf]
      %v347 = vld [vmem:[%s1 + $0x30] sm:$0xf]
      %v348 = vld [vmem:[%s1 + $0x34] sm:$0xf]
      %v349 = vld [vmem:[%s1 + $0x38] sm:$0xf]
      %v350 = vld [vmem:[%s1 + $0x3c] sm:$0xf]
      %v351 = vld [vmem:[%s1 + $0x40] sm:$0xf]
      %v352 = vld [vmem:[%s1 + $0x44] sm:$0xf]
      %v353 = vld [vmem:[%s1 + $0x48] sm:$0xf]
      %v354 = vld [vmem:[%s1 + $0x4c] sm:$0xf]
      %v355 = vld [vmem:[%s1 + $0x50] sm:$0xf]
      %v356 = vld [vmem:[%s1 + $0x54] sm:$0xf]
      %v357 = vld [vmem:[%s1 + $0x58] sm:$0xf]
      %v358 = vld [vmem:[%s1 + $0x5c] sm:$0xf]
      %v359 = vld [vmem:[%s1 + $0x60] sm:$0xf]
      %v360 = vld [vmem:[%s1 + $0x64] sm:$0xf]
      %v361 = vld [vmem:[%s1 + $0x68] sm:$0xf]
      %v362 = vld [vmem:[%s1 + $0x6c] sm:$0xf]
      %v363 = vld [vmem:[%s1 + $0x70] sm:$0xf]
      %v364 = vld [vmem:[%s1 + $0x74] sm:$0xf]
      %v365 = vld [vmem:[%s1 + $0x78] sm:$0xf]
      %v366 = vld [vmem:[%s1 + $0x7c] sm:$0xf]
      %v367 = vld [vmem:[%s1 + $0x80] sm:$0xf]
      %v368 = vld [vmem:[%s1 + $0x84] sm:$0xf]
      %v369 = vld [vmem:[%s1 + $0x88] sm:$0xf]
      %v370 = vld [vmem:[%s1 + $0x8c] sm:$0xf]
      %v371 = vld [vmem:[%s1 + $0x90] sm:$0xf]
      %v372 = vld [vmem:[%s1 + $0x94] sm:$0xf]
      %v373 = vld [vmem:[%s1 + $0x98] sm:$0xf]
      %v374 = vld [vmem:[%s1 + $0x9c] sm:$0xf]
      %v375 = vld [vmem:[%s1 + $0xa0] sm:$0xf]
      %v376 = vld [vmem:[%s1 + $0xa4] sm:$0xf]
      %v377 = vld [vmem:[%s1 + $0xa8] sm:$0xf]
      %v378 = vld [vmem:[%s1 + $0xac] sm:$0xf]
      %v379 = vld [vmem:[%s1 + $0xb0] sm:$0xf]
      %v380 = vld [vmem:[%s1 + $0xb4] sm:$0xf]
      %v381 = vld [vmem:[%s1 + $0xb8] sm:$0xf]
      %v382 = vld [vmem:[%s1 + $0xbc] sm:$0xf]
      %v383 = vld [vmem:[%s1 + $0xc0] sm:$0xf]
      %v384 = vld [vmem:[%s1 + $0xc4] sm:$0xf]
      %v385 = vld [vmem:[%s1 + $0xc8] sm:$0xf]
      %v386 = vld [vmem:[%s1 + $0xcc] sm:$0xf]
      %v387 = vld [vmem:[%s1 + $0xd0] sm:$0xf]
      %v388 = vld [vmem:[%s1 + $0xd4] sm:$0xf]
      %v389 = vld [vmem:[%s1 + $0xd8] sm:$0xf]
      %v390 = vld [vmem:[%s1 + $0xdc] sm:$0xf]
      %v391 = vld [vmem:[%s1 + $0xe0] sm:$0xf]
      %v392 = vld [vmem:[%s1 + $0xe4] sm:$0xf]
      %v393 = vld [vmem:[%s1 + $0xe8] sm:$0xf]
      %v394 = vld [vmem:[%s1 + $0xec] sm:$0xf]
      %v395 = vld [vmem:[%s1 + $0xf0] sm:$0xf]
      %v396 = vld [vmem:[%s1 + $0xf4] sm:$0xf]
      %v397 = vld [vmem:[%s1 + $0xf8] sm:$0xf]
      %v398 = vld [vmem:[%s1 + $0xfc] sm:$0xf]
      %v399 = vld [vmem:[%s1 + $0x100] sm:$0xf]
      %v400 = vld [vmem:[%s1 + $0x104] sm:$0xf]
      %v401 = vld [vmem:[%s1 + $0x108] sm:$0xf]
      %v402 = vld [vmem:[%s1 + $0x10c] sm:$0xf]
      %v403 = vld [vmem:[%s1 + $0x110] sm:$0xf]
      %v404 = vld [vmem:[%s1 + $0x114] sm:$0xf]
      %v405 = vld [vmem:[%s1 + $0x118] sm:$0xf]
      %v406 = vld [vmem:[%s1 + $0x11c] sm:$0xf]
      %v407 = vld [vmem:[%s2] sm:$0x1]
      %v409 = vlaneseq
      %v410 = vshrl.u32 %v409, 7
      %v411 = vsub.s32 0, %v410
      %v412 = vrot.slane %v407, %v411
      %v417 = vunpack.c.l.b16 %v332
      %v418 = vunpack.c.h.b16 %v332
      %v419 = vunpack.c.l.b16 %v333
      %v420 = vunpack.c.h.b16 %v333
      %v421 = vunpack.c.l.b16 %v334
      %v422 = vpack.c.b16 %v417, %v417
      %v423 = vpack.c.b16 %v418, %v418
      %v424 = vpack.c.b16 %v419, %v419
      %v425 = vpack.c.b16 %v420, %v420
      %v426 = vpack.c.b16 %v421, %v421
      %v503 = vunpack.c.l.b16 %v335
      %v504 = vunpack.c.l.b16 %v336
      %v505 = vunpack.c.l.b16 %v337
      %v506 = vunpack.c.l.b16 %v338
      %v507 = vunpack.c.l.b16 %v339
      %v508 = vunpack.c.l.b16 %v340
      %v509 = vunpack.c.l.b16 %v341
      %v510 = vunpack.c.l.b16 %v342
      %v511 = vunpack.c.l.b16 %v343
      %v512 = vunpack.c.l.b16 %v344
      %v513 = vunpack.c.l.b16 %v345
      %v514 = vunpack.c.l.b16 %v346
      %v515 = vunpack.c.l.b16 %v347
      %v516 = vunpack.c.l.b16 %v348
      %v517 = vunpack.c.l.b16 %v349
      %v518 = vunpack.c.l.b16 %v350
      %v519 = vunpack.c.l.b16 %v351
      %v520 = vunpack.c.l.b16 %v352
      %v521 = vunpack.c.l.b16 %v353
      %v522 = vunpack.c.l.b16 %v354
      %v523 = vunpack.c.l.b16 %v355
      %v524 = vunpack.c.l.b16 %v356
      %v525 = vunpack.c.l.b16 %v357
      %v526 = vunpack.c.l.b16 %v358
      %v527 = vunpack.c.l.b16 %v359
      %v528 = vunpack.c.l.b16 %v360
      %v529 = vunpack.c.l.b16 %v361
      %v530 = vunpack.c.l.b16 %v362
      %v531 = vunpack.c.l.b16 %v363
      %v532 = vunpack.c.l.b16 %v364
      %v533 = vunpack.c.l.b16 %v365
      %v534 = vunpack.c.l.b16 %v366
      %v535 = vunpack.c.l.b16 %v367
      %v536 = vunpack.c.l.b16 %v368
      %v537 = vunpack.c.l.b16 %v369
      %v538 = vunpack.c.l.b16 %v370
      %v539 = vunpack.c.l.b16 %v371
      %v540 = vunpack.c.l.b16 %v372
      %v541 = vunpack.c.l.b16 %v373
      %v542 = vunpack.c.l.b16 %v374
      %v543 = vunpack.c.l.b16 %v375
      %v544 = vunpack.c.l.b16 %v376
      %v545 = vunpack.c.l.b16 %v377
      %v546 = vunpack.c.l.b16 %v378
      %v547 = vunpack.c.l.b16 %v379
      %v548 = vunpack.c.l.b16 %v380
      %v549 = vunpack.c.l.b16 %v381
      %v550 = vunpack.c.l.b16 %v382
      %v551 = vunpack.c.l.b16 %v383
      %v552 = vunpack.c.l.b16 %v384
      %v553 = vunpack.c.l.b16 %v385
      %v554 = vunpack.c.l.b16 %v386
      %v555 = vunpack.c.l.b16 %v387
      %v556 = vunpack.c.l.b16 %v388
      %v557 = vunpack.c.l.b16 %v389
      %v558 = vunpack.c.l.b16 %v390
      %v559 = vunpack.c.l.b16 %v391
      %v560 = vunpack.c.l.b16 %v392
      %v561 = vunpack.c.l.b16 %v393
      %v562 = vunpack.c.l.b16 %v394
      %v563 = vunpack.c.l.b16 %v395
      %v564 = vunpack.c.l.b16 %v396
      %v565 = vunpack.c.l.b16 %v397
      %v566 = vunpack.c.l.b16 %v398
      %v567 = vunpack.c.l.b16 %v399
      %v568 = vunpack.c.l.b16 %v400
      %v569 = vunpack.c.l.b16 %v401
      %v570 = vunpack.c.l.b16 %v402
      %v571 = vunpack.c.l.b16 %v403
      %v572 = vunpack.c.l.b16 %v404
      %v573 = vunpack.c.l.b16 %v405
      %v574 = vunpack.c.l.b16 %v406
      %v575 = vpack.c.b16 %v504, %v503
      %v576 = vpack.c.b16 %v506, %v505
      %v577 = vpack.c.b16 %v508, %v507
      %v578 = vpack.c.b16 %v510, %v509
      %v579 = vpack.c.b16 %v512, %v511
      %v580 = vpack.c.b16 %v514, %v513
      %v581 = vpack.c.b16 %v516, %v515
      %v582 = vpack.c.b16 %v518, %v517
      %v583 = vpack.c.b16 %v520, %v519
      %v584 = vpack.c.b16 %v522, %v521
      %v585 = vpack.c.b16 %v524, %v523
      %v586 = vpack.c.b16 %v526, %v525
      %v587 = vpack.c.b16 %v528, %v527
      %v588 = vpack.c.b16 %v530, %v529
      %v589 = vpack.c.b16 %v532, %v531
      %v590 = vpack.c.b16 %v534, %v533
      %v591 = vpack.c.b16 %v536, %v535
      %v592 = vpack.c.b16 %v538, %v537
      %v593 = vpack.c.b16 %v540, %v539
      %v594 = vpack.c.b16 %v542, %v541
      %v595 = vpack.c.b16 %v544, %v543
      %v596 = vpack.c.b16 %v546, %v545
      %v597 = vpack.c.b16 %v548, %v547
      %v598 = vpack.c.b16 %v550, %v549
      %v599 = vpack.c.b16 %v552, %v551
      %v600 = vpack.c.b16 %v554, %v553
      %v601 = vpack.c.b16 %v556, %v555
      %v602 = vpack.c.b16 %v558, %v557
      %v603 = vpack.c.b16 %v560, %v559
      %v604 = vpack.c.b16 %v562, %v561
      %v605 = vpack.c.b16 %v564, %v563
      %v606 = vpack.c.b16 %v566, %v565
      %v607 = vpack.c.b16 %v568, %v567
      %v608 = vpack.c.b16 %v570, %v569
      %v609 = vpack.c.b16 %v572, %v571
      %v610 = vpack.c.b16 %v574, %v573
      %vm647 = vcmask 523264
      %v649 = vsel %vm647, %v426, 0
      %651 = vmatprep.subr.bf16.mxu0 0
      %652 = vmatpush1.bf16.msra.mxu0 %v575
      %653 = vmatprep.subr.bf16.mxu0 0
      %654 = vmatpush1.bf16.msra.mxu0 %v576
      %655 = vmatprep.subr.bf16.mxu0 0
      %656 = vmatpush1.bf16.msra.mxu0 %v577
      %657 = vmatprep.subr.bf16.mxu0 0
      %658 = vmatpush1.bf16.msra.mxu0 %v578
      %659 = vmatprep.subr.bf16.mxu0 0
      %660 = vmatpush1.bf16.msra.mxu0 %v579
      %661 = vmatprep.subr.bf16.mxu0 0
      %662 = vmatpush1.bf16.msra.mxu0 %v580
      %663 = vmatprep.subr.bf16.mxu0 0
      %664 = vmatpush1.bf16.msra.mxu0 %v581
      %665 = vmatprep.subr.bf16.mxu0 0
      %666 = vmatpush1.bf16.msra.mxu0 %v582
      %667 = vmatprep.subr.bf16.mxu0 0
      %668 = vmatpush1.bf16.msra.mxu0 %v583
      %669 = vmatprep.subr.bf16.mxu0 0
      %670 = vmatpush1.bf16.msra.mxu0 %v584
      %671 = vmatprep.subr.bf16.mxu0 0
      %672 = vmatpush1.bf16.msra.mxu0 %v585
      %673 = vmatprep.subr.bf16.mxu0 0
      %674 = vmatpush1.bf16.msra.mxu0 %v586
      %675 = vmatprep.subr.bf16.mxu0 0
      %676 = vmatpush1.bf16.msra.mxu0 %v587
      %677 = vmatprep.subr.bf16.mxu0 0
      %678 = vmatpush1.bf16.msra.mxu0 %v588
      %679 = vmatprep.subr.bf16.mxu0 0
      %680 = vmatpush1.bf16.msra.mxu0 %v589
      %681 = vmatprep.subr.bf16.mxu0 0
      %682 = vmatpush1.bf16.msra.mxu0 %v590
      %683 = vmatprep.mubr.bf16.mxu0 %v423
      %684 = vmatmul.mubr.bf16.gmra.mrb[0].mxu0 %v422
      %v685 = vpop.f32.mrb[0].mxu0
      %v686 = vadd.f32 %v412, %v685
      %v687 = vpop.f32.mrb[0].mxu0
      %v688 = vpop.f32.mrb[0].mxu0
      %v689 = vpop.f32.mrb[0].mxu0
      %690 = vdwg.mxu0
      %691 = vmatprep.subr.bf16.mxu0 0
      %692 = vmatpush1.bf16.msra.mxu0 %v591
      %693 = vmatprep.subr.bf16.mxu0 0
      %694 = vmatpush1.bf16.msra.mxu0 %v592
      %695 = vmatprep.subr.bf16.mxu0 0
      %696 = vmatpush1.bf16.msra.mxu0 %v593
      %697 = vmatprep.subr.bf16.mxu0 0
      %698 = vmatpush1.bf16.msra.mxu0 %v594
      %699 = vmatprep.subr.bf16.mxu0 0
      %700 = vmatpush1.bf16.msra.mxu0 %v595
      %701 = vmatprep.subr.bf16.mxu0 0
      %702 = vmatpush1.bf16.msra.mxu0 %v596
      %703 = vmatprep.subr.bf16.mxu0 0
      %704 = vmatpush1.bf16.msra.mxu0 %v597
      %705 = vmatprep.subr.bf16.mxu0 0
      %706 = vmatpush1.bf16.msra.mxu0 %v598
      %707 = vmatprep.subr.bf16.mxu0 0
      %708 = vmatpush1.bf16.msra.mxu0 %v599
      %709 = vmatprep.subr.bf16.mxu0 0
      %710 = vmatpush1.bf16.msra.mxu0 %v600
      %711 = vmatprep.subr.bf16.mxu0 0
      %712 = vmatpush1.bf16.msra.mxu0 %v601
      %713 = vmatprep.subr.bf16.mxu0 0
      %714 = vmatpush1.bf16.msra.mxu0 %v602
      %715 = vmatprep.subr.bf16.mxu0 0
      %716 = vmatpush1.bf16.msra.mxu0 %v603
      %717 = vmatprep.subr.bf16.mxu0 0
      %718 = vmatpush1.bf16.msra.mxu0 %v604
      %719 = vmatprep.subr.bf16.mxu0 0
      %720 = vmatpush1.bf16.msra.mxu0 %v605
      %721 = vmatprep.subr.bf16.mxu0 0
      %722 = vmatpush1.bf16.msra.mxu0 %v606
      %723 = vmatprep.mubr.bf16.mxu0 %v425
      %724 = vmatmul.mubr.bf16.gmra.mrb[0].mxu0 %v424
      %v725 = vpop.f32.mrb[0].mxu0
      %v726 = vadd.f32 %v686, %v725
      %v727 = vpop.f32.mrb[0].mxu0
      %v728 = vpop.f32.mrb[0].mxu0
      %v729 = vpop.f32.mrb[0].mxu0
      %730 = vdwg.mxu0
      %731 = vmatprep.subr.bf16.mxu0 0
      %732 = vmatpush1.bf16.msra.mxu0 %v607
      %733 = vmatprep.subr.bf16.mxu0 0
      %734 = vmatpush1.bf16.msra.mxu0 %v608
      %735 = vmatprep.subr.bf16.mxu0 0
      %736 = vmatpush1.bf16.msra.mxu0 %v609
      %737 = vmatprep.subr.bf16.mxu0 0
      %738 = vmatpush1.bf16.msra.mxu0 %v610
      %739 = vmatprep.subr.bf16.mxu0 0
      %740 = vmatpush1.bf16.msra.mxu0 0
      %741 = vmatprep.subr.bf16.mxu0 0
      %742 = vmatpush1.bf16.msra.mxu0 0
      %743 = vmatprep.subr.bf16.mxu0 0
      %744 = vmatpush1.bf16.msra.mxu0 0
      %745 = vmatprep.subr.bf16.mxu0 0
      %746 = vmatpush1.bf16.msra.mxu0 0
      %747 = vmatprep.subr.bf16.mxu0 0
      %748 = vmatpush1.bf16.msra.mxu0 0
      %749 = vmatprep.subr.bf16.mxu0 0
      %750 = vmatpush1.bf16.msra.mxu0 0
      %751 = vmatprep.subr.bf16.mxu0 0
      %752 = vmatpush1.bf16.msra.mxu0 0
      %753 = vmatprep.subr.bf16.mxu0 0
      %754 = vmatpush1.bf16.msra.mxu0 0
      %755 = vmatprep.subr.bf16.mxu0 0
      %756 = vmatpush1.bf16.msra.mxu0 0
      %757 = vmatprep.subr.bf16.mxu0 0
      %758 = vmatpush1.bf16.msra.mxu0 0
      %759 = vmatprep.subr.bf16.mxu0 0
      %760 = vmatpush1.bf16.msra.mxu0 0
      %761 = vmatprep.subr.bf16.mxu0 0
      %762 = vmatpush1.bf16.msra.mxu0 0
      %763 = vmatprep.mubr.bf16.mxu0 0
      %764 = vmatmul.mubr.bf16.gmra.mrb[0].mxu0 %v649
      %v765 = vpop.f32.mrb[0].mxu0
      %v766 = vadd.f32 %v726, %v765
      %v767 = vpop.f32.mrb[0].mxu0
      %v768 = vpop.f32.mrb[0].mxu0
      %v769 = vpop.f32.mrb[0].mxu0
      %770 = vdwg.mxu0
      %v771 = vmax.f32 %v766, 0.0
      %v772 = vpack.c.bf16 %v771, %v771
      %v773 = vld [vmem:[%s3] sm:$0xf]
      %v774 = vld [vmem:[%s3 + $0x4] sm:$0xf]
      %v775 = vld [vmem:[%s3 + $0x8] sm:$0xf]
      %v776 = vld [vmem:[%s3 + $0xc] sm:$0xf]
      %v777 = vld [vmem:[%s4] sm:$0x1]
      %v779 = vlaneseq
      %v780 = vshrl.u32 %v779, 7
      %v781 = vsub.s32 0, %v780
      %v782 = vrot.slane %v777, %v781
      %v788 = vunpack.c.l.b16 %v773
      %v789 = vunpack.c.l.b16 %v774
      %v790 = vunpack.c.l.b16 %v775
      %v791 = vunpack.c.l.b16 %v776
      %v792 = vpack.c.b16 %v789, %v788
      %v793 = vpack.c.b16 %v791, %v790
      %vm796 = vcmask 261120
      %v798 = vsel %vm796, %v772, 0
      %800 = vmatprep.subr.bf16.mxu0 0
      %801 = vmatpush1.bf16.msra.mxu0 %v792
      %802 = vmatprep.subr.bf16.mxu0 0
      %803 = vmatpush1.bf16.msra.mxu0 %v793
      %804 = vmatprep.subr.bf16.mxu0 0
      %805 = vmatpush1.bf16.msra.mxu0 0
      %806 = vmatprep.subr.bf16.mxu0 0
      %807 = vmatpush1.bf16.msra.mxu0 0
      %808 = vmatprep.subr.bf16.mxu0 0
      %809 = vmatpush1.bf16.msra.mxu0 0
      %810 = vmatprep.subr.bf16.mxu0 0
      %811 = vmatpush1.bf16.msra.mxu0 0
      %812 = vmatprep.subr.bf16.mxu0 0
      %813 = vmatpush1.bf16.msra.mxu0 0
      %814 = vmatprep.subr.bf16.mxu0 0
      %815 = vmatpush1.bf16.msra.mxu0 0
      %816 = vmatprep.subr.bf16.mxu0 0
      %817 = vmatpush1.bf16.msra.mxu0 0
      %818 = vmatprep.subr.bf16.mxu0 0
      %819 = vmatpush1.bf16.msra.mxu0 0
      %820 = vmatprep.subr.bf16.mxu0 0
      %821 = vmatpush1.bf16.msra.mxu0 0
      %822 = vmatprep.subr.bf16.mxu0 0
      %823 = vmatpush1.bf16.msra.mxu0 0
      %824 = vmatprep.subr.bf16.mxu0 0
      %825 = vmatpush1.bf16.msra.mxu0 0
      %826 = vmatprep.subr.bf16.mxu0 0
      %827 = vmatpush1.bf16.msra.mxu0 0
      %828 = vmatprep.subr.bf16.mxu0 0
      %829 = vmatpush1.bf16.msra.mxu0 0
      %830 = vmatprep.subr.bf16.mxu0 0
      %831 = vmatpush1.bf16.msra.mxu0 0
      %832 = vmatprep.mubr.bf16.mxu0 0
      %833 = vmatmul.mubr.bf16.gmra.mrb[0].mxu0 %v798
      %v834 = vpop.f32.mrb[0].mxu0
      %v835 = vadd.f32 %v782, %v834
      %v836 = vpop.f32.mrb[0].mxu0
      %v837 = vpop.f32.mrb[0].mxu0
      %v838 = vpop.f32.mrb[0].mxu0
      %839 = vdwg.mxu0
      %v840 = vmax.f32 %v835, 0.0
      %v841 = vpack.c.bf16 %v840, %v840
      %v842 = vld [vmem:[%s5] sm:$0xf]
      %v843 = vld [vmem:[%s5 + $0x4] sm:$0xf]
      %v844 = vld [vmem:[%s6] sm:$0x1]
      %v846 = vlaneseq
      %v847 = vshrl.u32 %v846, 7
      %v848 = vsub.s32 0, %v847
      %v849 = vrot.slane %v844, %v848
      %v853 = vunpack.c.l.b16 %v842
      %v854 = vunpack.c.l.b16 %v843
      %v855 = vpack.c.b16 %v854, %v853
      %vm857 = vcmask 130048
      %v859 = vsel %vm857, %v841, 0
      %861 = vmatprep.subr.bf16.mxu0 0
      %862 = vmatpush1.bf16.msra.mxu0 %v855
      %863 = vmatprep.subr.bf16.mxu0 0
      %864 = vmatpush1.bf16.msra.mxu0 0
      %865 = vmatprep.subr.bf16.mxu0 0
      %866 = vmatpush1.bf16.msra.mxu0 0
      %867 = vmatprep.subr.bf16.mxu0 0
      %868 = vmatpush1.bf16.msra.mxu0 0
      %869 = vmatprep.subr.bf16.mxu0 0
      %870 = vmatpush1.bf16.msra.mxu0 0
      %871 = vmatprep.subr.bf16.mxu0 0
      %872 = vmatpush1.bf16.msra.mxu0 0
      %873 = vmatprep.subr.bf16.mxu0 0
      %874 = vmatpush1.bf16.msra.mxu0 0
      %875 = vmatprep.subr.bf16.mxu0 0
      %876 = vmatpush1.bf16.msra.mxu0 0
      %877 = vmatprep.subr.bf16.mxu0 0
      %878 = vmatpush1.bf16.msra.mxu0 0
      %879 = vmatprep.subr.bf16.mxu0 0
      %880 = vmatpush1.bf16.msra.mxu0 0
      %881 = vmatprep.subr.bf16.mxu0 0
      %882 = vmatpush1.bf16.msra.mxu0 0
      %883 = vmatprep.subr.bf16.mxu0 0
      %884 = vmatpush1.bf16.msra.mxu0 0
      %885 = vmatprep.subr.bf16.mxu0 0
      %886 = vmatpush1.bf16.msra.mxu0 0
      %887 = vmatprep.subr.bf16.mxu0 0
      %888 = vmatpush1.bf16.msra.mxu0 0
      %889 = vmatprep.subr.bf16.mxu0 0
      %890 = vmatpush1.bf16.msra.mxu0 0
      %891 = vmatprep.subr.bf16.mxu0 0
      %892 = vmatpush1.bf16.msra.mxu0 0
      %893 = vmatprep.mubr.bf16.mxu0 0
      %894 = vmatmul.mubr.bf16.gmra.mrb[0].mxu0 %v859
      %v895 = vpop.f32.mrb[0].mxu0
      %v896 = vadd.f32 %v849, %v895
      %v897 = vpop.f32.mrb[0].mxu0
      %v898 = vpop.f32.mrb[0].mxu0
      %v899 = vpop.f32.mrb[0].mxu0
      %900 = vdwg.mxu0
      %v901 = vmax.f32 %v896, 0.0
      %v902 = vpack.c.bf16 %v901, %v901
      %v903 = vld [vmem:[%s7] sm:$0x3]
      %v904 = vld [vmem:[%s8] sm:$0x1]
      %v906 = vlaneseq
      %v907 = vshrl.u32 %v906, 7
      %v908 = vsub.s32 0, %v907
      %v909 = vrot.slane %v904, %v908
      %vm911 = vcmask 31744
      %v913 = vsel %vm911, %v902, 0
      %vm915 = vcmask 1041408
      %v917 = vsel %vm915, %v903, 0
      %919 = vmatprep.subr.bf16.mxu0 0
      %920 = vmatpush1.bf16.msra.mxu0 %v917
      %921 = vmatprep.subr.bf16.mxu0 0
      %922 = vmatpush1.bf16.msra.mxu0 0
      %923 = vmatprep.subr.bf16.mxu0 0
      %924 = vmatpush1.bf16.msra.mxu0 0
      %925 = vmatprep.subr.bf16.mxu0 0
      %926 = vmatpush1.bf16.msra.mxu0 0
      %927 = vmatprep.subr.bf16.mxu0 0
      %928 = vmatpush1.bf16.msra.mxu0 0
      %929 = vmatprep.subr.bf16.mxu0 0
      %930 = vmatpush1.bf16.msra.mxu0 0
      %931 = vmatprep.subr.bf16.mxu0 0
      %932 = vmatpush1.bf16.msra.mxu0 0
      %933 = vmatprep.subr.bf16.mxu0 0
      %934 = vmatpush1.bf16.msra.mxu0 0
      %935 = vmatprep.subr.bf16.mxu0 0
      %936 = vmatpush1.bf16.msra.mxu0 0
      %937 = vmatprep.subr.bf16.mxu0 0
      %938 = vmatpush1.bf16.msra.mxu0 0
      %939 = vmatprep.subr.bf16.mxu0 0
      %940 = vmatpush1.bf16.msra.mxu0 0
      %941 = vmatprep.subr.bf16.mxu0 0
      %942 = vmatpush1.bf16.msra.mxu0 0
      %943 = vmatprep.subr.bf16.mxu0 0
      %944 = vmatpush1.bf16.msra.mxu0 0
      %945 = vmatprep.subr.bf16.mxu0 0
      %946 = vmatpush1.bf16.msra.mxu0 0
      %947 = vmatprep.subr.bf16.mxu0 0
      %948 = vmatpush1.bf16.msra.mxu0 0
      %949 = vmatprep.subr.bf16.mxu0 0
      %950 = vmatpush1.bf16.msra.mxu0 0
      %951 = vmatprep.mubr.bf16.mxu0 0
      %952 = vmatmul.mubr.bf16.gmra.mrb[0].mxu0 %v913
      %v953 = vpop.f32.mrb[0].mxu0
      %v954 = vadd.f32 %v909, %v953
      %v955 = vpop.f32.mrb[0].mxu0
      %v956 = vpop.f32.mrb[0].mxu0
      %v957 = vpop.f32.mrb[0].mxu0
      %958 = vdwg.mxu0
      %959 = vmax.xlane.f32.xlu0 %v954
      %v960 = vpop.xlane.xlu0 %959
      %v961 = vsub.f32 %v954, %v960
      %v962 = vmul.f32 %v961, 1.442695
      %v963 = vpow.pop %v962
      %964 = vadd.xlane.f32.xlu0 %v963
      %v965 = vpop.xlane.xlu0 %964
      %v966 = vlog2.pop %v965
      %v967 = vmul.f32 %v966, 0.6931472
      %v968 = vsub.f32 %v961, %v967
      %969 = vst [vmem:[%s330] sm:$0xff] %v968
      %p970 = scmp.lt.s32.totalorder %s20, 1
      %s971 = scalar_select %p970, %s20, 1
      %s972 = smul.addr %s971, 8
      %s973 = scalar_lea.vmem %s9, %s972
      // Predicated region
      $region57: #{cfc_forward.1} parent=55 // pred_check
        %p974 = pneg %p232
      $region58: #{cfc_forward.1} parent=55 // pred_check_branch
        %976 = sbr.rel (%p974) target = $region60
      $region59: #{cfc_forward.1} parent=55 // pred_region
        _
      $region60: #{cfc_forward.1} parent=55 // pred_fallthru
        _
    $region56: #{cfc_forward.1} parent=5 // pred_fallthru
      _
    %p977 = scmp.le.s32.totalorder 2, %s15
    // Predicated region
    $region61: #{cfc_forward.1} parent=5 // pred_check
      %p978 = pneg %p977
    $region62: #{cfc_forward.1} parent=5 // pred_check_branch
      %980 = sbr.rel (%p978) target = $region64
    $region63: #{cfc_forward.1} parent=5 // pred_region
      %s981 = ssub.s32 %s15, 2
      // Predicated region
      $region65: #{cfc_forward.1} parent=63 // pred_check
        %p982 = pneg %p238
      $region66: #{cfc_forward.1} parent=63 // pred_check_branch
        %984 = sbr.rel (%p982) target = $region68
      $region67: #{cfc_forward.1} parent=63 // pred_region
        %p985 = scmp.lt.s32.totalorder %s21, 1
        %s986 = scalar_select %p985, %s21, 1
        %s987 = smul.addr %s986, 8
        %s988 = scalar_lea.vmem %s9, %s987
      $region68: #{cfc_forward.1} parent=63 // pred_fallthru
        _
    $region64: #{cfc_forward.1} parent=5 // pred_fallthru
      _
  $region6: #{cfc_forward.1} parent=0 // loop_footer
    %s19 = sadd.s32 1, %s15
  $region7: #{cfc_forward.1} parent=0 // loop_footer_branch
    %14 = sbr.rel target = $region3
  $region8: #{cfc_forward.1} parent=0 // loop_exit
    _

</llo_original>
